<compile_context>
chip_gen: v7x
topology: tpu7x:2x2x1
jax: 0.10.0
libtpu: 0.0.40
codegen_flags: <defaults>
</compile_context>

<pallas_src>
import numpy as np
import jax
import jax.numpy as jnp
from jax.experimental import pallas as pl
from jax.experimental.pallas import tpu as pltpu

S0, S1 = 3, 3               # transform size s=(3, 3)
P = S0 * S1                 # 9 spatial positions per batch element
MAX_TN = 8192               # max batch elements (lanes) per grid step
_HALF_SQRT3 = 0.8660254037844386


def _ifft2_kernel(x_ref, o_ref):
    """x_ref: (9, TN)  row-major flattened 3x3 inputs, one batch element per lane.
       o_ref: (18, TN) rows 0..8 = real part, rows 9..17 = imaginary part."""
    # Build stacked [Re; Im] of M = kron(F3, F3), F3[n,k] = exp(+2j*pi*n*k/3)/3
    # (norm='backward').  Specialized to s=(3,3): the phase 2*pi*(n0*k0+n1*k1)/3
    # only depends on t = (n0*k0 + n1*k1) mod 3, so cos/sin take 3 exact values.
    # Only iota / compare / select / int add-mul are used (no vector int div).
    r = jax.lax.broadcasted_iota(jnp.int32, (2 * P, P), 0)   # output row 0..17
    c = jax.lax.broadcasted_iota(jnp.int32, (2 * P, P), 1)   # input  col 0..8
    is_imag = r >= P
    p = jnp.where(is_imag, r - P, r)                          # 0..8
    n0 = (p >= S1).astype(jnp.int32) + (p >= 2 * S1).astype(jnp.int32)
    n1 = p - S1 * n0
    k0 = (c >= S1).astype(jnp.int32) + (c >= 2 * S1).astype(jnp.int32)
    k1 = c - S1 * k0
    t0 = n0 * k0 + n1 * k1                                    # 0..8
    t = t0 - 3 * ((t0 >= 3).astype(jnp.int32) + (t0 >= 6).astype(jnp.int32))
    cos_v = jnp.where(t == 0, jnp.float32(1.0), jnp.float32(-0.5))
    sin_v = jnp.where(t == 0, jnp.float32(0.0),
                      jnp.where(t == 1, jnp.float32(_HALF_SQRT3),
                                jnp.float32(-_HALF_SQRT3)))
    m = jnp.where(is_imag, sin_v, cos_v) * jnp.float32(1.0 / P)   # (18, 9)

    o_ref[...] = jnp.dot(m, x_ref[...], preferred_element_type=jnp.float32)


def _round_up(a, b):
    return -(-a // b) * b


def ifftn_s33(x):
    """Equivalent of torch.fft.ifftn(x, s=(3,3), dim=(-2,-1), norm='backward')
    for real-valued x.  Returns complex64."""
    # TODO(synk): complex-valued inputs (accepted by torch.fft.ifftn) would need
    # a second (imaginary) input stream; this kernel assumes real input.
    x = jnp.asarray(x, jnp.float32)
    *lead, H, W = x.shape

    # torch `s` semantics on the transformed dims: crop to the first s[i]
    # elements if larger, zero-pad at the end if smaller.
    x = x[..., :S0, :S1]
    pad = [(0, 0)] * len(lead) + [(0, S0 - x.shape[-2]), (0, S1 - x.shape[-1])]
    x = jnp.pad(x, pad)

    out_shape = tuple(lead) + (S0, S1)
    B = int(np.prod(lead)) if lead else 1
    if B == 0:
        # zero-size tensor: nothing to transform, and a size-0 Pallas grid
        # cannot be launched -> empty complex result (matches torch).
        return jnp.zeros(out_shape, jnp.complex64)

    # Lane-dense layout: batch on the last (lane) axis.
    xT = x.reshape(B, P).T                                    # (9, B)
    nblk = -(-B // MAX_TN)                                    # grid steps
    TN = _round_up(-(-B // nblk), 128)                        # lanes per step
    Bp = nblk * TN
    xT = jnp.pad(xT, ((0, 0), (0, Bp - B)))

    out = pl.pallas_call(
        _ifft2_kernel,
        out_shape=jax.ShapeDtypeStruct((2 * P, Bp), jnp.float32),
        grid_spec=pltpu.PrefetchScalarGridSpec(
            num_scalar_prefetch=0,
            grid=(nblk,),
            in_specs=[pl.BlockSpec((P, TN), lambda i: (0, i))],
            out_specs=pl.BlockSpec((2 * P, TN), lambda i: (0, i)),
        ),
        compiler_params=pltpu.CompilerParams(
            dimension_semantics=("parallel",)),
    )(xT)

    # Combine stacked halves into complex64 and restore (..., 3, 3) layout.
    y = jax.lax.complex(out[:P, :B], out[P:, :B])             # (9, B)
    return y.T.reshape(out_shape)


if __name__ == "__main__":
    key = jax.random.PRNGKey(0)

    # regular input exercising the 4x4 -> 3x3 crop (B = 2*4*4 = 32)
    x = jax.random.normal(key, (2, 4, 4, 4), dtype=jnp.float32)
    out = ifftn_s33(x)
    jax.block_until_ready(out)
    ref = jnp.fft.ifftn(x, s=(S0, S1), axes=(-2, -1), norm="backward")
    np.testing.assert_allclose(np.asarray(out), np.asarray(ref),
                               atol=1e-5, rtol=1e-5)

    # input smaller than s along one transformed dim -> zero-pad path
    x_small = jax.random.normal(jax.random.PRNGKey(1), (3, 5, 2, 4),
                                dtype=jnp.float32)
    out_small = ifftn_s33(x_small)
    jax.block_until_ready(out_small)
    ref_small = jnp.fft.ifftn(x_small, s=(S0, S1), axes=(-2, -1),
                              norm="backward")
    np.testing.assert_allclose(np.asarray(out_small), np.asarray(ref_small),
                               atol=1e-5, rtol=1e-5)

    # zero-size input (the case this module is named after)
    x0 = jnp.zeros((0, 3, 3), jnp.float32)
    out0 = ifftn_s33(x0)
    jax.block_until_ready(out0)
    assert out0.shape == (0, 3, 3) and out0.dtype == jnp.complex64

    print("KERNEL_OK")
</pallas_src>

<mosaic_0001>
module attributes {stable_mosaic.version = 11 : i64} {
  func.func @_ifft2_kernel(%arg0: i32, %arg1: memref<9x128xf32, #tpu.memory_space<vmem>>, %arg2: memref<18x128xf32, #tpu.memory_space<vmem>>) attributes {dimension_semantics = [#tpu.dimension_semantics<parallel>], iteration_bounds = array<i64: 1>, scalar_prefetch = 0 : i64, scratch_operands = 0 : i64, tpu.core_type = #tpu.core_type<tc>, window_params = [{transform_indices = @transform_0, window_bounds = array<i64: 9, 128>}, {transform_indices = @transform_1, window_bounds = array<i64: 18, 128>}]} {
    %0 = tpu.iota {dimensions = array<i32: 0>} : vector<18x9xi32>
    %1 = tpu.iota {dimensions = array<i32: 1>} : vector<18x9xi32>
    %c9_i32 = arith.constant 9 : i32
    %2 = vector.broadcast %c9_i32 : i32 to vector<18x9xi32>
    %3 = arith.cmpi sge, %0, %2 : vector<18x9xi32>
    %c9_i32_0 = arith.constant 9 : i32
    %4 = vector.broadcast %c9_i32_0 : i32 to vector<18x9xi32>
    %5 = arith.subi %0, %4 : vector<18x9xi32>
    %6 = arith.select %3, %5, %0 : vector<18x9xi1>, vector<18x9xi32>
    %c3_i32 = arith.constant 3 : i32
    %7 = vector.broadcast %c3_i32 : i32 to vector<18x9xi32>
    %8 = arith.cmpi sge, %6, %7 : vector<18x9xi32>
    %9 = arith.extui %8 : vector<18x9xi1> to vector<18x9xi32>
    %c6_i32 = arith.constant 6 : i32
    %10 = vector.broadcast %c6_i32 : i32 to vector<18x9xi32>
    %11 = arith.cmpi sge, %6, %10 : vector<18x9xi32>
    %12 = arith.extui %11 : vector<18x9xi1> to vector<18x9xi32>
    %13 = arith.addi %9, %12 : vector<18x9xi32>
    %c3_i32_1 = arith.constant 3 : i32
    %14 = vector.broadcast %c3_i32_1 : i32 to vector<18x9xi32>
    %15 = arith.muli %14, %13 : vector<18x9xi32>
    %16 = arith.subi %6, %15 : vector<18x9xi32>
    %c3_i32_2 = arith.constant 3 : i32
    %17 = vector.broadcast %c3_i32_2 : i32 to vector<18x9xi32>
    %18 = arith.cmpi sge, %1, %17 : vector<18x9xi32>
    %19 = arith.extui %18 : vector<18x9xi1> to vector<18x9xi32>
    %c6_i32_3 = arith.constant 6 : i32
    %20 = vector.broadcast %c6_i32_3 : i32 to vector<18x9xi32>
    %21 = arith.cmpi sge, %1, %20 : vector<18x9xi32>
    %22 = arith.extui %21 : vector<18x9xi1> to vector<18x9xi32>
    %23 = arith.addi %19, %22 : vector<18x9xi32>
    %c3_i32_4 = arith.constant 3 : i32
    %24 = vector.broadcast %c3_i32_4 : i32 to vector<18x9xi32>
    %25 = arith.muli %24, %23 : vector<18x9xi32>
    %26 = arith.subi %1, %25 : vector<18x9xi32>
    %27 = arith.muli %13, %23 : vector<18x9xi32>
    %28 = arith.muli %16, %26 : vector<18x9xi32>
    %29 = arith.addi %27, %28 : vector<18x9xi32>
    %c3_i32_5 = arith.constant 3 : i32
    %30 = vector.broadcast %c3_i32_5 : i32 to vector<18x9xi32>
    %31 = arith.cmpi sge, %29, %30 : vector<18x9xi32>
    %32 = arith.extui %31 : vector<18x9xi1> to vector<18x9xi32>
    %c6_i32_6 = arith.constant 6 : i32
    %33 = vector.broadcast %c6_i32_6 : i32 to vector<18x9xi32>
    %34 = arith.cmpi sge, %29, %33 : vector<18x9xi32>
    %35 = arith.extui %34 : vector<18x9xi1> to vector<18x9xi32>
    %36 = arith.addi %32, %35 : vector<18x9xi32>
    %c3_i32_7 = arith.constant 3 : i32
    %37 = vector.broadcast %c3_i32_7 : i32 to vector<18x9xi32>
    %38 = arith.muli %37, %36 : vector<18x9xi32>
    %39 = arith.subi %29, %38 : vector<18x9xi32>
    %c0_i32 = arith.constant 0 : i32
    %40 = vector.broadcast %c0_i32 : i32 to vector<18x9xi32>
    %41 = arith.cmpi eq, %39, %40 : vector<18x9xi32>
    %cst = arith.constant 1.000000e+00 : f32
    %cst_8 = arith.constant -5.000000e-01 : f32
    %42 = vector.broadcast %cst : f32 to vector<18x9xf32>
    %43 = vector.broadcast %cst_8 : f32 to vector<18x9xf32>
    %44 = arith.select %41, %42, %43 : vector<18x9xi1>, vector<18x9xf32>
    %c0_i32_9 = arith.constant 0 : i32
    %45 = vector.broadcast %c0_i32_9 : i32 to vector<18x9xi32>
    %46 = arith.cmpi eq, %39, %45 : vector<18x9xi32>
    %c1_i32 = arith.constant 1 : i32
    %47 = vector.broadcast %c1_i32 : i32 to vector<18x9xi32>
    %48 = arith.cmpi eq, %39, %47 : vector<18x9xi32>
    %cst_10 = arith.constant 0.866025388 : f32
    %cst_11 = arith.constant -0.866025388 : f32
    %49 = vector.broadcast %cst_10 : f32 to vector<18x9xf32>
    %50 = vector.broadcast %cst_11 : f32 to vector<18x9xf32>
    %51 = arith.select %48, %49, %50 : vector<18x9xi1>, vector<18x9xf32>
    %cst_12 = arith.constant 0.000000e+00 : f32
    %52 = vector.broadcast %cst_12 : f32 to vector<18x9xf32>
    %53 = arith.select %46, %52, %51 : vector<18x9xi1>, vector<18x9xf32>
    %54 = arith.select %3, %53, %44 : vector<18x9xi1>, vector<18x9xf32>
    %cst_13 = arith.constant 0.111111112 : f32
    %55 = vector.broadcast %cst_13 : f32 to vector<18x9xf32>
    %56 = arith.mulf %54, %55 : vector<18x9xf32>
    %c0 = arith.constant 0 : index
    %c0_14 = arith.constant 0 : index
    %57 = vector.load %arg1[%c0, %c0_14] : memref<9x128xf32, #tpu.memory_space<vmem>>, vector<9x128xf32>
    %cst_15 = arith.constant dense<0.000000e+00> : vector<18x128xf32>
    %58 = tpu.matmul %56, %57, %cst_15 {dimension_numbers = #tpu.dot_dimension_numbers<[1], [0], [0], [1], [0, 0, 1, 1], [], []>} : vector<18x9xf32>, vector<9x128xf32>, vector<18x128xf32> -> vector<18x128xf32>
    %c0_16 = arith.constant 0 : index
    %c0_17 = arith.constant 0 : index
    %59 = vector.load %arg2[%c0_16, %c0_17] : memref<18x128xf32, #tpu.memory_space<vmem>>, vector<18x128xf32>
    tpu.vector_store %arg2[%c0_16, %c0_17], %58 {strides = array<i32>} : memref<18x128xf32, #tpu.memory_space<vmem>>, vector<18x128xf32>,
    return
  }
  func.func @transform_0(%arg0: i32) -> (i32, i32) {
    %c0_i32 = arith.constant 0 : i32
    %c0_i32_0 = arith.constant 0 : i32
    return %c0_i32, %arg0 : i32, i32
  }
  func.func @transform_1(%arg0: i32) -> (i32, i32) {
    %c0_i32 = arith.constant 0 : i32
    %c0_i32_0 = arith.constant 0 : i32
    return %c0_i32, %arg0 : i32, i32
  }
}

</mosaic_0001>

<llo_original>
// kernel: tpu_custom_call.1
$region0: #{tpu_custom_call.1}
  #allocation0 [shape = 'u32[]', space=smem, size = 0x4, offset = 0x4, fixed_abs, tag = 'smem constant byte address 0x4 - core index']
  #allocation1 [shape = 'u32[144,128]{1,0:T(1,128)}', space=vmem, size = 0x12000, scoped, tag = 'internal scratch']
  %s0 = inlined_call_operand.hbm [shape: f32[9,128], index: 0, kind: input, shape index: {}]
  %s1 = inlined_call_operand.hbm [shape: f32[18,128], index: 1, kind: output, shape index: {}]
  %s2 = sld [smem:[#allocation0]]
  $region18: #{tpu_custom_call.1} parent=0
    _
  %s4 = ssub.s32 1, %s2
  %s5 = scalar_select 0, %s4, %s2
  $region1: #{tpu_custom_call.1} parent=0
    #allocation2 [shape = 'u8[8192]{0}', space=vmem, size = 0x2000, scoped, tag = 'input window, operand 0, single buffered']
    #allocation3 [shape = 's32[1]{0}', space=sflag, size = 0x4, scoped, tag = 'scoped memory for tpu_custom_call.1']
    #allocation4 [shape = 's32[1]{0}', space=sflag, size = 0x4, scoped, tag = 'scoped memory for tpu_custom_call.1']
    #allocation5 [shape = 'u8[12288]{0}', space=vmem, size = 0x3000, scoped, tag = 'output window, operand 0, single buffered']
    %6 = vsyncpa [#allocation3], 0
    %7 = vsyncpa [#allocation4], 0
    // Predicated region
    $region2: #{tpu_custom_call.1} parent=1 // pred_check
      _
    $region3: #{tpu_custom_call.1} parent=1 // pred_check_branch
      %9 = sbr.rel (0) target = $region5
    $region4: #{tpu_custom_call.1} parent=1 // pred_region
      %s11 = ssub.s32 256, 256
      %12 = vsyncadd [#allocation3], %s11
      %s13 = sshll.u32 [#allocation2], 4
      %s14 = int_to_ptr.vmem [resolvable:$true] %s13
      %19 = dma.hbm_to_vmem [thread:$0]  %s0, 256, %s14, [#allocation3], 128, 128, 8
    $region5: #{tpu_custom_call.1} parent=1 // pred_fallthru
      _
    // Predicated region
    $region6: #{tpu_custom_call.1} parent=1 // pred_check
      _
    $region7: #{tpu_custom_call.1} parent=1 // pred_check_branch
      %21 = sbr.rel (0) target = $region9
    $region8: #{tpu_custom_call.1} parent=1 // pred_region
      %22 = dma.done [#allocation3], 256
    $region9: #{tpu_custom_call.1} parent=1 // pred_fallthru
      _
    %v23 = vlaneseq
    %v24 = vshrl.u32 %v23, 7
    %v25 = vadd.s32 %v24, 8
    %v26 = vadd.s32 %v24, 16
    %v27 = vlaneseq
    %v28 = vand.u32 %v27, 127
    %vm29 = vcmp.ge.s32.totalorder %v24, 9
    %vm30 = vcmp.ge.s32.totalorder %v25, 9
    %vm31 = vcmp.ge.s32.totalorder %v26, 9
    %v32 = vsub.s32 %v24, 9
    %v33 = vsub.s32 %v25, 9
    %v34 = vsub.s32 %v26, 9
    %v35 = vsel %vm29, %v32, %v24
    %v36 = vsel %vm30, %v33, %v25
    %v37 = vsel %vm31, %v34, %v26
    %vm38 = vcmp.ge.s32.totalorder %v35, 3
    %vm39 = vcmp.ge.s32.totalorder %v36, 3
    %vm40 = vcmp.ge.s32.totalorder %v37, 3
    %v41 = vsel %vm38, 1, 0
    %v42 = vsel %vm39, 1, 0
    %v43 = vsel %vm40, 1, 0
    %vm44 = vcmp.ge.s32.totalorder %v35, 6
    %vm45 = vcmp.ge.s32.totalorder %v36, 6
    %vm46 = vcmp.ge.s32.totalorder %v37, 6
    %v47 = vsel %vm44, 1, 0
    %v48 = vsel %vm45, 1, 0
    %v49 = vsel %vm46, 1, 0
    %v50 = vadd.s32 %v41, %v47
    %v51 = vadd.s32 %v42, %v48
    %v52 = vadd.s32 %v43, %v49
    %v53 = vmul.u32 %v50, 3
    %v54 = vmul.u32 %v51, 3
    %v55 = vmul.u32 %v52, 3
    %v56 = vsub.s32 %v35, %v53
    %v57 = vsub.s32 %v36, %v54
    %v58 = vsub.s32 %v37, %v55
    %vm59 = vcmp.ge.s32.totalorder %v28, 3
    %v60 = vsel %vm59, 1, 0
    %vm61 = vcmp.ge.s32.totalorder %v28, 6
    %v62 = vsel %vm61, 1, 0
    %v63 = vadd.s32 %v60, %v62
    %v64 = vmul.u32 %v63, 3
    %v65 = vsub.s32 %v28, %v64
    %v66 = vmul.u32 %v50, %v63
    %v67 = vmul.u32 %v51, %v63
    %v68 = vmul.u32 %v52, %v63
    %v69 = vmul.u32 %v56, %v65
    %v70 = vmul.u32 %v57, %v65
    %v71 = vmul.u32 %v58, %v65
    %v72 = vadd.s32 %v66, %v69
    %v73 = vadd.s32 %v67, %v70
    %v74 = vadd.s32 %v68, %v71
    %vm75 = vcmp.ge.s32.totalorder %v72, 3
    %vm76 = vcmp.ge.s32.totalorder %v73, 3
    %vm77 = vcmp.ge.s32.totalorder %v74, 3
    %v78 = vsel %vm75, 1, 0
    %v79 = vsel %vm76, 1, 0
    %v80 = vsel %vm77, 1, 0
    %vm81 = vcmp.ge.s32.totalorder %v72, 6
    %vm82 = vcmp.ge.s32.totalorder %v73, 6
    %vm83 = vcmp.ge.s32.totalorder %v74, 6
    %v84 = vsel %vm81, 1, 0
    %v85 = vsel %vm82, 1, 0
    %v86 = vsel %vm83, 1, 0
    %v87 = vadd.s32 %v78, %v84
    %v88 = vadd.s32 %v79, %v85
    %v89 = vadd.s32 %v80, %v86
    %v90 = vmul.u32 %v87, 3
    %v91 = vmul.u32 %v88, 3
    %v92 = vmul.u32 %v89, 3
    %v93 = vsub.s32 %v72, %v90
    %v94 = vsub.s32 %v73, %v91
    %v95 = vsub.s32 %v74, %v92
    %vm96 = vcmp.eq.s32.totalorder %v93, 0
    %vm97 = vcmp.eq.s32.totalorder %v94, 0
    %vm98 = vcmp.eq.s32.totalorder %v95, 0
    %v99 = vsel %vm96, 1.0, -0.5
    %v100 = vsel %vm97, 1.0, -0.5
    %v101 = vsel %vm98, 1.0, -0.5
    %vm102 = vcmp.eq.s32.totalorder %v93, 1
    %vm103 = vcmp.eq.s32.totalorder %v94, 1
    %vm104 = vcmp.eq.s32.totalorder %v95, 1
    %v105 = vsel %vm102, 0.8660254, -0.8660254
    %v106 = vsel %vm103, 0.8660254, -0.8660254
    %v107 = vsel %vm104, 0.8660254, -0.8660254
    %v108 = vsel %vm96, 0.0, %v105
    %v109 = vsel %vm97, 0.0, %v106
    %v110 = vsel %vm98, 0.0, %v107
    %v111 = vsel %vm29, %v108, %v99
    %v112 = vsel %vm30, %v109, %v100
    %v113 = vsel %vm31, %v110, %v101
    %v114 = vmul.f32 %v111, 0.11111111
    %v115 = vmul.f32 %v112, 0.11111111
    %v116 = vmul.f32 %v113, 0.11111111
    %v117 = vld [vmem:[#allocation2] sm:$0xff]
    %v118 = vld [vmem:[#allocation2 + $0x8] sm:$0x1]
    %vm119 = vcmask 72704
    %v121 = vsel %vm119, %v114, 0
    %v124 = vsel %vm119, %v115, 0
    %v127 = vsel %vm119, %v116, 0
    %vm129 = vcmask 1040384
    %v131 = vsel %vm129, %v118, 0
    %133 = vmatprep.subr.mxu0 0.0
    %134 = vmatpush1.msra.mxu0 %v117
    %135 = vmatprep.subr.mxu0 0.0
    %136 = vmatpush1.msra.mxu0 %v131
    %137 = vmatprep.subr.mxu0 0.0
    %138 = vmatpush1.msra.mxu0 0.0
    %139 = vmatprep.subr.mxu0 0.0
    %140 = vmatpush1.msra.mxu0 0.0
    %141 = vmatprep.subr.mxu0 0.0
    %142 = vmatpush1.msra.mxu0 0.0
    %143 = vmatprep.subr.mxu0 0.0
    %144 = vmatpush1.msra.mxu0 0.0
    %145 = vmatprep.subr.mxu0 0.0
    %146 = vmatpush1.msra.mxu0 0.0
    %147 = vmatprep.subr.mxu0 0.0
    %148 = vmatpush1.msra.mxu0 0.0
    %149 = vmatprep.subr.mxu0 0.0
    %150 = vmatpush1.msra.mxu0 0.0
    %151 = vmatprep.subr.mxu0 0.0
    %152 = vmatpush1.msra.mxu0 0.0
    %153 = vmatprep.subr.mxu0 0.0
    %154 = vmatpush1.msra.mxu0 0.0
    %155 = vmatprep.subr.mxu0 0.0
    %156 = vmatpush1.msra.mxu0 0.0
    %157 = vmatprep.subr.mxu0 0.0
    %158 = vmatpush1.msra.mxu0 0.0
    %159 = vmatprep.subr.mxu0 0.0
    %160 = vmatpush1.msra.mxu0 0.0
    %161 = vmatprep.subr.mxu0 0.0
    %162 = vmatpush1.msra.mxu0 0.0
    %163 = vmatprep.subr.mxu0 0.0
    %164 = vmatpush1.msra.mxu0 0.0
    %165 = vmatprep.subr.mxu0 0.0
    %166 = vmatpush1.msra.mxu0 0.0
    %167 = vmatprep.subr.mxu0 0.0
    %168 = vmatpush1.msra.mxu0 0.0
    %169 = vmatprep.subr.mxu0 0.0
    %170 = vmatpush1.msra.mxu0 0.0
    %171 = vmatprep.subr.mxu0 0.0
    %172 = vmatpush1.msra.mxu0 0.0
    %173 = vmatprep.subr.mxu0 0.0
    %174 = vmatpush1.msra.mxu0 0.0
    %175 = vmatprep.subr.mxu0 0.0
    %176 = vmatpush1.msra.mxu0 0.0
    %177 = vmatprep.subr.mxu0 0.0
    %178 = vmatpush1.msra.mxu0 0.0
    %179 = vmatprep.subr.mxu0 0.0
    %180 = vmatpush1.msra.mxu0 0.0
    %181 = vmatprep.subr.mxu0 0.0
    %182 = vmatpush1.msra.mxu0 0.0
    %183 = vmatprep.subr.mxu0 0.0
    %184 = vmatpush1.msra.mxu0 0.0
    %185 = vmatprep.subr.mxu0 0.0
    %186 = vmatpush1.msra.mxu0 0.0
    %187 = vmatprep.subr.mxu0 0.0
    %188 = vmatpush1.msra.mxu0 0.0
    %189 = vmatprep.subr.mxu0 0.0
    %190 = vmatpush1.msra.mxu0 0.0
    %191 = vmatprep.subr.mxu0 0.0
    %192 = vmatpush1.msra.mxu0 0.0
    %193 = vmatprep.subr.mxu0 0.0
    %194 = vmatpush1.msra.mxu0 0.0
    %195 = vmatprep.subr.mxu0 0.0
    %196 = vmatpush1.msra.mxu0 0.0
    %197 = vmatprep.mubr.f32.mxu0 0.0
    %198 = vmatmul.mubr.f32.gmra.mrb[0].mxu0 %v121
    %v199 = vpop.f32.mrb[0].mxu0
    %v200 = vadd.f32 0.0, %v199
    %v201 = vpop.f32.mrb[0].mxu0
    %202 = vmatprep.mubr.f32.mxu0 0.0
    %203 = vmatmul.mubr.f32.gmra.mrb[0].mxu0 %v124
    %v204 = vpop.f32.mrb[0].mxu0
    %v205 = vadd.f32 0.0, %v204
    %v206 = vpop.f32.mrb[0].mxu0
    %207 = vmatprep.mubr.f32.mxu0 0.0
    %208 = vmatmul.mubr.f32.gmra.mrb[0].mxu0 %v127
    %v209 = vpop.f32.mrb[0].mxu0
    %v210 = vadd.f32 0.0, %v209
    %v211 = vpop.f32.mrb[0].mxu0
    %212 = vdwg.mxu0
    %213 = vst [vmem:[#allocation5] sm:$0xff] %v200
    %214 = vst [vmem:[#allocation5 + $0x8] sm:$0xff] %v205
    %215 = vst [vmem:[#allocation5 + $0x10] sm:$0x3] %v210
    // Predicated region
    $region10: #{tpu_custom_call.1} parent=1 // pred_check
      _
    $region11: #{tpu_custom_call.1} parent=1 // pred_check_branch
      %217 = sbr.rel (0) target = $region13
    $region12: #{tpu_custom_call.1} parent=1 // pred_region
      %s219 = ssub.s32 384, 384
      %220 = vsyncadd [#allocation4], %s219
      %s221 = sshll.u32 [#allocation5], 4
      %s222 = int_to_ptr.vmem [resolvable:$true] %s221
      %227 = dma.vmem_to_hbm [thread:$0]  %s222, 384, %s1, [#allocation4], 128, 128, 8
    $region13: #{tpu_custom_call.1} parent=1 // pred_fallthru
      _
    // Predicated region
    $region14: #{tpu_custom_call.1} parent=1 // pred_check
      _
    $region15: #{tpu_custom_call.1} parent=1 // pred_check_branch
      %229 = sbr.rel (0) target = $region17
    $region16: #{tpu_custom_call.1} parent=1 // pred_region
      %230 = dma.done [#allocation4], 384
    $region17: #{tpu_custom_call.1} parent=1 // pred_fallthru
      _
    %231 = vsyncpa [#allocation3], 1
    %232 = vsyncpa [#allocation4], 1

</llo_original>
